<compile_context>
chip_gen: v6e
topology: v6e:2x2x1
jax: 0.10.0
libtpu: 0.0.40
codegen_flags: <defaults>
</compile_context>

<pallas_src>
import functools
import itertools

import numpy as np

import jax
import jax.numpy as jnp
from jax import lax
from jax.experimental import pallas as pl
from jax.experimental.pallas import tpu as pltpu


_LANES = 128


def _gram_kernel(emb_ref, k_ref, *, n_pad):
    """Compute K[x, y] = ||e_y||^2 - 2 * e_x . e_y once (MXU + one sublane reduce)."""
    e = emb_ref[...]                                               # (N_pad, D_pad) f32
    g = lax.dot_general(e, e, (((1,), (1,)), ((), ())),
                        preferred_element_type=jnp.float32)        # (N_pad, N_pad)
    eye = (lax.broadcasted_iota(jnp.int32, (n_pad, n_pad), 0) ==
           lax.broadcasted_iota(jnp.int32, (n_pad, n_pad), 1)).astype(jnp.float32)
    norms_row = jnp.sum(g * eye, axis=0, keepdims=True)            # (1, N_pad) = diag(G)
    k_ref[...] = norms_row - 2.0 * g


def _triplet_tile_kernel(nvalid_ref, idx_ref, k_ref, out_ref, *,
                         margin, tile_t, n_pad):
    t = pl.program_id(0)

    col = lax.broadcasted_iota(jnp.int32, (tile_t, n_pad), 1)
    a_oh = (col == idx_ref[:, 0:1]).astype(jnp.float32)            # (tile_t, N_pad)
    p_oh = (col == idx_ref[:, 1:2]).astype(jnp.float32)
    n_oh = (col == idx_ref[:, 2:3]).astype(jnp.float32)

    # Gather the anchor rows of K with one MXU matmul: ka[i, :] = K[a_i, :]
    ka = jnp.dot(a_oh, k_ref[...], preferred_element_type=jnp.float32)

    # d_ap - d_an == K[a, p] - K[a, n]
    diff = jnp.sum(ka * (p_oh - n_oh), axis=-1, keepdims=True)     # (tile_t, 1)
    hinge = jnp.maximum(diff + margin, 0.0)

    # Mask padded tail triplets against the runtime valid count.
    rows = lax.broadcasted_iota(jnp.int32, (tile_t, 1), 0) + t * tile_t
    valid = rows < nvalid_ref[0]
    out_ref[...] = jnp.where(valid, hinge, 0.0)


def _all_triplets(labels):
    """AllTripletSelector-equivalent: every (anchor, positive, negative)."""
    labels = np.asarray(labels)
    triplets = []
    for label in np.unique(labels):
        label_mask = labels == label
        label_indices = np.where(label_mask)[0]
        if len(label_indices) < 2:
            continue
        negative_indices = np.where(~label_mask)[0]
        for a, p in itertools.combinations(label_indices, 2):
            for n in negative_indices:
                triplets.append((a, p, n))
    if not triplets:
        return np.zeros((0, 3), dtype=np.int32)
    return np.asarray(triplets, dtype=np.int32)


def _vmem_limit(nbytes):
    # 2x headroom, clamped to [16 MiB, 40 MiB] (safe for v5e scoped default and
    # well under v7x's 64 MiB physical VMEM).
    return int(min(max(2 * nbytes, 16 * 1024 * 1024), 40 * 1024 * 1024))


def online_triplet_loss(embeddings, target, margin, *,
                        triplet_selector=_all_triplets, tile_t=512):
    """Equivalent of OnlineTripletLoss(margin, selector).forward(embeddings, target).

    Returns (mean_loss, num_triplets).
    """
    emb = jnp.asarray(embeddings, jnp.float32)
    if emb.ndim != 2:
        raise ValueError("embeddings must be (batch, dim)")
    N, D = emb.shape

    triplets = np.asarray(triplet_selector(np.asarray(target)), dtype=np.int32)
    T = int(triplets.shape[0])
    if T == 0:
        # torch: mean of empty tensor -> nan
        return jnp.array(float("nan"), jnp.float32), 0

    # --- padding (jnp.pad / np.pad only; no scatter copies) ---
    N_pad = max(pl.cdiv(N, _LANES) * _LANES, _LANES)
    D_pad = max(pl.cdiv(D, _LANES) * _LANES, _LANES)
    emb_p = jnp.pad(emb, ((0, N_pad - N), (0, D_pad - D)))

    # Bucket the triplet count to power-of-two tile counts (limits recompiles).
    num_tiles = int(pl.next_power_of_2(pl.cdiv(T, tile_t)))
    T_pad = num_tiles * tile_t
    idx_p = jnp.asarray(np.pad(triplets, ((0, T_pad - T), (0, 0))), jnp.int32)
    num_valid = jnp.array([T], jnp.int32)

    k_bytes = N_pad * N_pad * 4
    emb_bytes = N_pad * D_pad * 4

    # --- phase 1: K table (one small MXU matmul, whole arrays VMEM-resident) ---
    k_mat = pl.pallas_call(
        functools.partial(_gram_kernel, n_pad=N_pad),
        out_shape=jax.ShapeDtypeStruct((N_pad, N_pad), jnp.float32),
        compiler_params=pltpu.CompilerParams(
            vmem_limit_bytes=_vmem_limit(emb_bytes + k_bytes)),
    )(emb_p)

    # --- phase 2: vectorized per-tile triplet hinge losses ---
    tile_work = 6 * tile_t * N_pad * 4   # one-hots + gathered K rows (f32 temps)
    losses = pl.pallas_call(
        functools.partial(_triplet_tile_kernel, margin=float(margin),
                          tile_t=int(tile_t), n_pad=int(N_pad)),
        out_shape=jax.ShapeDtypeStruct((T_pad, 1), jnp.float32),
        grid_spec=pltpu.PrefetchScalarGridSpec(
            num_scalar_prefetch=1,               # num_valid -> SMEM scalar
            grid=(num_tiles,),
            in_specs=[
                # triplet indices: normal VMEM-tiled blocks along the grid axis
                pl.BlockSpec((tile_t, 3), lambda t, nv: (t, 0)),
                # K table resident across all steps (constant block index).
                # TODO(synk): pipeline_mode=pl.Buffered(1) would halve its VMEM
                # footprint (useful on v7x); left at default for compile safety.
                pl.BlockSpec((N_pad, N_pad), lambda t, nv: (0, 0)),
            ],
            out_specs=pl.BlockSpec((tile_t, 1), lambda t, nv: (t, 0)),
        ),
        compiler_params=pltpu.CompilerParams(
            dimension_semantics=("parallel",),   # distinct output block per step
            vmem_limit_bytes=_vmem_limit(2 * k_bytes + 2 * tile_t * 16 + tile_work),
        ),
    )(num_valid, idx_p, k_mat)

    # Padded entries are zeroed in-kernel; the tiny reduction + mean in the wrapper.
    mean_loss = jnp.sum(losses) / jnp.float32(T)
    return mean_loss, T


def _online_triplet_loss_ref(embeddings, target, margin, triplets):
    emb = jnp.asarray(embeddings, jnp.float32)
    trip = jnp.asarray(triplets, jnp.int32)
    ea = emb[trip[:, 0]]
    ep = emb[trip[:, 1]]
    en = emb[trip[:, 2]]
    ap = jnp.sum((ea - ep) ** 2, axis=1)
    an = jnp.sum((ea - en) ** 2, axis=1)
    return jnp.mean(jnp.maximum(ap - an + margin, 0.0))


if __name__ == "__main__":
    key = jax.random.PRNGKey(0)

    batch, hidden = 8, 32
    embeddings = jax.random.normal(key, (batch, hidden), dtype=jnp.float32)
    labels = jnp.array([0, 0, 1, 1, 2, 2, 3, 3], dtype=jnp.int32)
    margin = 1.0

    loss, n_triplets = online_triplet_loss(embeddings, labels, margin)
    loss = jax.block_until_ready(loss)

    triplets = _all_triplets(np.asarray(labels))
    ref = _online_triplet_loss_ref(embeddings, labels, margin, triplets)

    assert n_triplets == int(triplets.shape[0]), (n_triplets, triplets.shape[0])
    # Slightly looser tolerance: Gram-matrix form (||p||^2-||n||^2-2a.p+2a.n)
    # can lose a few ulps to cancellation vs. the direct difference form.
    assert jnp.allclose(loss, ref, rtol=1e-4, atol=1e-4), (loss, ref)

    print("KERNEL_OK")
</pallas_src>

<mosaic_0001>
module attributes {stable_mosaic.version = 11 : i64} {
  func.func @_gram_kernel(%arg0: memref<128x128xf32, #tpu.memory_space<vmem>>, %arg1: memref<128x128xf32, #tpu.memory_space<vmem>>) attributes {dimension_semantics = [], scalar_prefetch = 0 : i64, scratch_operands = 0 : i64, tpu.core_type = #tpu.core_type<tc>} {
    %c0 = arith.constant 0 : index
    %c0_0 = arith.constant 0 : index
    %0 = vector.load %arg0[%c0, %c0_0] : memref<128x128xf32, #tpu.memory_space<vmem>>, vector<128x128xf32>
    %cst = arith.constant dense<0.000000e+00> : vector<128x128xf32>
    %1 = tpu.matmul %0, %0, %cst {dimension_numbers = #tpu.dot_dimension_numbers<[1], [1], [0], [0], [0, 0, 1, 0], [], []>} : vector<128x128xf32>, vector<128x128xf32>, vector<128x128xf32> -> vector<128x128xf32>
    %2 = tpu.iota {dimensions = array<i32: 0>} : vector<128x128xi32>
    %3 = tpu.iota {dimensions = array<i32: 1>} : vector<128x128xi32>
    %4 = arith.cmpi eq, %2, %3 : vector<128x128xi32>
    %5 = arith.extui %4 : vector<128x128xi1> to vector<128x128xi32>
    %6 = arith.sitofp %5 : vector<128x128xi32> to vector<128x128xf32>
    %7 = arith.mulf %1, %6 : vector<128x128xf32>
    %cst_1 = arith.constant dense<0.000000e+00> : vector<128xf32>
    %8 = vector.multi_reduction <add>, %7, %cst_1 [0] : vector<128x128xf32> to vector<128xf32>
    %9 = vector.shape_cast %8 : vector<128xf32> to vector<1x128xf32>
    %cst_2 = arith.constant 2.000000e+00 : f32
    %10 = vector.broadcast %cst_2 : f32 to vector<128x128xf32>
    %11 = arith.mulf %10, %1 : vector<128x128xf32>
    %12 = vector.broadcast %9 : vector<1x128xf32> to vector<128x128xf32>
    %13 = arith.subf %12, %11 : vector<128x128xf32>
    %c0_3 = arith.constant 0 : index
    %c0_4 = arith.constant 0 : index
    %14 = vector.load %arg1[%c0_3, %c0_4] : memref<128x128xf32, #tpu.memory_space<vmem>>, vector<128x128xf32>
    tpu.vector_store %arg1[%c0_3, %c0_4], %13 {strides = array<i32>} : memref<128x128xf32, #tpu.memory_space<vmem>>, vector<128x128xf32>,
    return
  }
}

</mosaic_0001>

<llo_original>
// kernel: tpu_custom_call.1
$region0: #{tpu_custom_call.1}
  #allocation0 [shape = 'u32[]', space=smem, size = 0x4, offset = 0x4, fixed_abs, tag = 'smem constant byte address 0x4 - core index']
  #allocation1 [shape = 'u32[144,128]{1,0:T(1,128)}', space=vmem, size = 0x12000, scoped, tag = 'internal scratch']
  %s0 = inlined_call_operand.hbm [shape: f32[128,128], index: 0, kind: input, shape index: {}]
  %s1 = inlined_call_operand.hbm [shape: f32[128,128], index: 1, kind: output, shape index: {}]
  %s2 = sld [smem:[#allocation0]]
  $region18: #{tpu_custom_call.1} parent=0
    _
  %s4 = ssub.s32 1, %s2
  %s5 = scalar_select 0, %s4, %s2
  $region1: #{tpu_custom_call.1} parent=0
    #allocation2 [shape = 'u8[65536]{0}', space=vmem, size = 0x10000, scoped, tag = 'input window, operand 0, single buffered']
    #allocation3 [shape = 's32[1]{0}', space=sflag, size = 0x4, scoped, tag = 'scoped memory for tpu_custom_call.1']
    #allocation4 [shape = 's32[1]{0}', space=sflag, size = 0x4, scoped, tag = 'scoped memory for tpu_custom_call.1']
    #allocation5 [shape = 'u8[65536]{0}', space=vmem, size = 0x10000, scoped, tag = 'output window, operand 0, single buffered']
    %6 = vsyncpa [#allocation3], 0
    %7 = vsyncpa [#allocation4], 0
    // Predicated region
    $region2: #{tpu_custom_call.1} parent=1 // pred_check
      _
    $region3: #{tpu_custom_call.1} parent=1 // pred_check_branch
      %9 = sbr.rel (0) target = $region5
    $region4: #{tpu_custom_call.1} parent=1 // pred_region
      %s11 = ssub.s32 2048, 2048
      %12 = vsyncadd [#allocation3], %s11
      %s13 = sshll.u32 [#allocation2], 4
      %s14 = int_to_ptr.vmem [resolvable:$true] %s13
      %19 = dma.hbm_to_vmem [thread:$0]  %s0, 2048, %s14, [#allocation3], 128, 128, 8
    $region5: #{tpu_custom_call.1} parent=1 // pred_fallthru
      _
    // Predicated region
    $region6: #{tpu_custom_call.1} parent=1 // pred_check
      _
    $region7: #{tpu_custom_call.1} parent=1 // pred_check_branch
      %21 = sbr.rel (0) target = $region9
    $region8: #{tpu_custom_call.1} parent=1 // pred_region
      %22 = dma.done [#allocation3], 2048
    $region9: #{tpu_custom_call.1} parent=1 // pred_fallthru
      _
    %v23 = vld [vmem:[#allocation2] sm:$0xff]
    %v24 = vld [vmem:[#allocation2 + $0x8] sm:$0xff]
    %v25 = vld [vmem:[#allocation2 + $0x10] sm:$0xff]
    %v26 = vld [vmem:[#allocation2 + $0x18] sm:$0xff]
    %v27 = vld [vmem:[#allocation2 + $0x20] sm:$0xff]
    %v28 = vld [vmem:[#allocation2 + $0x28] sm:$0xff]
    %v29 = vld [vmem:[#allocation2 + $0x30] sm:$0xff]
    %v30 = vld [vmem:[#allocation2 + $0x38] sm:$0xff]
    %v31 = vld [vmem:[#allocation2 + $0x40] sm:$0xff]
    %v32 = vld [vmem:[#allocation2 + $0x48] sm:$0xff]
    %v33 = vld [vmem:[#allocation2 + $0x50] sm:$0xff]
    %v34 = vld [vmem:[#allocation2 + $0x58] sm:$0xff]
    %v35 = vld [vmem:[#allocation2 + $0x60] sm:$0xff]
    %v36 = vld [vmem:[#allocation2 + $0x68] sm:$0xff]
    %v37 = vld [vmem:[#allocation2 + $0x70] sm:$0xff]
    %v38 = vld [vmem:[#allocation2 + $0x78] sm:$0xff]
    %39 = vmatprep.subr.mxu0 0.0
    %40 = vmatpush1.xpose.msra.mxu0 %v38
    %41 = vmatprep.subr.mxu0 0.0
    %42 = vmatpush1.xpose.msra.mxu0 %v37
    %43 = vmatprep.subr.mxu0 0.0
    %44 = vmatpush1.xpose.msra.mxu0 %v36
    %45 = vmatprep.subr.mxu0 0.0
    %46 = vmatpush1.xpose.msra.mxu0 %v35
    %47 = vmatprep.subr.mxu0 0.0
    %48 = vmatpush1.xpose.msra.mxu0 %v34
    %49 = vmatprep.subr.mxu0 0.0
    %50 = vmatpush1.xpose.msra.mxu0 %v33
    %51 = vmatprep.subr.mxu0 0.0
    %52 = vmatpush1.xpose.msra.mxu0 %v32
    %53 = vmatprep.subr.mxu0 0.0
    %54 = vmatpush1.xpose.msra.mxu0 %v31
    %55 = vmatprep.subr.mxu0 0.0
    %56 = vmatpush1.xpose.msra.mxu0 %v30
    %57 = vmatprep.subr.mxu0 0.0
    %58 = vmatpush1.xpose.msra.mxu0 %v29
    %59 = vmatprep.subr.mxu0 0.0
    %60 = vmatpush1.xpose.msra.mxu0 %v28
    %61 = vmatprep.subr.mxu0 0.0
    %62 = vmatpush1.xpose.msra.mxu0 %v27
    %63 = vmatprep.subr.mxu0 0.0
    %64 = vmatpush1.xpose.msra.mxu0 %v26
    %65 = vmatprep.subr.mxu0 0.0
    %66 = vmatpush1.xpose.msra.mxu0 %v25
    %67 = vmatprep.subr.mxu0 0.0
    %68 = vmatpush1.xpose.msra.mxu0 %v24
    %69 = vmatprep.subr.mxu0 0.0
    %70 = vmatpush1.xpose.msra.mxu0 %v23
    %71 = vmatprep.subr.mxu0 0.0
    %72 = vmatpush2.xpose.msra.mxu0 0.0
    %73 = vmatprep.subr.mxu0 0.0
    %74 = vmatpush2.xpose.msra.mxu0 0.0
    %75 = vmatprep.subr.mxu0 0.0
    %76 = vmatpush2.xpose.msra.mxu0 0.0
    %77 = vmatprep.subr.mxu0 0.0
    %78 = vmatpush2.xpose.msra.mxu0 0.0
    %79 = vmatprep.subr.mxu0 0.0
    %80 = vmatpush2.xpose.msra.mxu0 0.0
    %81 = vmatprep.subr.mxu0 0.0
    %82 = vmatpush2.xpose.msra.mxu0 0.0
    %83 = vmatprep.subr.mxu0 0.0
    %84 = vmatpush2.xpose.msra.mxu0 0.0
    %85 = vmatprep.subr.mxu0 0.0
    %86 = vmatpush2.xpose.msra.mxu0 0.0
    %87 = vmatprep.subr.mxu0 0.0
    %88 = vmatpush2.xpose.msra.mxu0 0.0
    %89 = vmatprep.subr.mxu0 0.0
    %90 = vmatpush2.xpose.msra.mxu0 0.0
    %91 = vmatprep.subr.mxu0 0.0
    %92 = vmatpush2.xpose.msra.mxu0 0.0
    %93 = vmatprep.subr.mxu0 0.0
    %94 = vmatpush2.xpose.msra.mxu0 0.0
    %95 = vmatprep.subr.mxu0 0.0
    %96 = vmatpush2.xpose.msra.mxu0 0.0
    %97 = vmatprep.subr.mxu0 0.0
    %98 = vmatpush2.xpose.msra.mxu0 0.0
    %99 = vmatprep.subr.mxu0 0.0
    %100 = vmatpush2.xpose.msra.mxu0 0.0
    %101 = vmatprep.subr.mxu0 0.0
    %102 = vmatpush2.xpose.msra.mxu0 0.0
    %103 = vmatprep.mubr.f32.mxu0 0.0
    %104 = vmatmul.mubr.f32.gmra.mxu0 %v23
    %v105 = vpop.f32.mrf.mxu0
    %v106 = vadd.f32 0.0, %v105
    %v107 = vpop.f32.mrf.mxu0
    %108 = vmatprep.mubr.f32.mxu0 0.0
    %109 = vmatmul.mubr.f32.gmra.mxu0 %v24
    %v110 = vpop.f32.mrf.mxu0
    %v111 = vadd.f32 0.0, %v110
    %v112 = vpop.f32.mrf.mxu0
    %113 = vmatprep.mubr.f32.mxu0 0.0
    %114 = vmatmul.mubr.f32.gmra.mxu0 %v25
    %v115 = vpop.f32.mrf.mxu0
    %v116 = vadd.f32 0.0, %v115
    %v117 = vpop.f32.mrf.mxu0
    %118 = vmatprep.mubr.f32.mxu0 0.0
    %119 = vmatmul.mubr.f32.gmra.mxu0 %v26
    %v120 = vpop.f32.mrf.mxu0
    %v121 = vadd.f32 0.0, %v120
    %v122 = vpop.f32.mrf.mxu0
    %123 = vmatprep.mubr.f32.mxu0 0.0
    %124 = vmatmul.mubr.f32.gmra.mxu0 %v27
    %v125 = vpop.f32.mrf.mxu0
    %v126 = vadd.f32 0.0, %v125
    %v127 = vpop.f32.mrf.mxu0
    %128 = vmatprep.mubr.f32.mxu0 0.0
    %129 = vmatmul.mubr.f32.gmra.mxu0 %v28
    %v130 = vpop.f32.mrf.mxu0
    %v131 = vadd.f32 0.0, %v130
    %v132 = vpop.f32.mrf.mxu0
    %133 = vmatprep.mubr.f32.mxu0 0.0
    %134 = vmatmul.mubr.f32.gmra.mxu0 %v29
    %v135 = vpop.f32.mrf.mxu0
    %v136 = vadd.f32 0.0, %v135
    %v137 = vpop.f32.mrf.mxu0
    %138 = vmatprep.mubr.f32.mxu0 0.0
    %139 = vmatmul.mubr.f32.gmra.mxu0 %v30
    %v140 = vpop.f32.mrf.mxu0
    %v141 = vadd.f32 0.0, %v140
    %v142 = vpop.f32.mrf.mxu0
    %143 = vmatprep.mubr.f32.mxu0 0.0
    %144 = vmatmul.mubr.f32.gmra.mxu0 %v31
    %v145 = vpop.f32.mrf.mxu0
    %v146 = vadd.f32 0.0, %v145
    %v147 = vpop.f32.mrf.mxu0
    %148 = vmatprep.mubr.f32.mxu0 0.0
    %149 = vmatmul.mubr.f32.gmra.mxu0 %v32
    %v150 = vpop.f32.mrf.mxu0
    %v151 = vadd.f32 0.0, %v150
    %v152 = vpop.f32.mrf.mxu0
    %153 = vmatprep.mubr.f32.mxu0 0.0
    %154 = vmatmul.mubr.f32.gmra.mxu0 %v33
    %v155 = vpop.f32.mrf.mxu0
    %v156 = vadd.f32 0.0, %v155
    %v157 = vpop.f32.mrf.mxu0
    %158 = vmatprep.mubr.f32.mxu0 0.0
    %159 = vmatmul.mubr.f32.gmra.mxu0 %v34
    %v160 = vpop.f32.mrf.mxu0
    %v161 = vadd.f32 0.0, %v160
    %v162 = vpop.f32.mrf.mxu0
    %163 = vmatprep.mubr.f32.mxu0 0.0
    %164 = vmatmul.mubr.f32.gmra.mxu0 %v35
    %v165 = vpop.f32.mrf.mxu0
    %v166 = vadd.f32 0.0, %v165
    %v167 = vpop.f32.mrf.mxu0
    %168 = vmatprep.mubr.f32.mxu0 0.0
    %169 = vmatmul.mubr.f32.gmra.mxu0 %v36
    %v170 = vpop.f32.mrf.mxu0
    %v171 = vadd.f32 0.0, %v170
    %v172 = vpop.f32.mrf.mxu0
    %173 = vmatprep.mubr.f32.mxu0 0.0
    %174 = vmatmul.mubr.f32.gmra.mxu0 %v37
    %v175 = vpop.f32.mrf.mxu0
    %v176 = vadd.f32 0.0, %v175
    %v177 = vpop.f32.mrf.mxu0
    %178 = vmatprep.mubr.f32.mxu0 0.0
    %179 = vmatmul.mubr.f32.gmra.mxu0 %v38
    %v180 = vpop.f32.mrf.mxu0
    %v181 = vadd.f32 0.0, %v180
    %v182 = vpop.f32.mrf.mxu0
    %183 = vdwg.mxu0
    %v184 = vlaneseq
    %v185 = vshrl.u32 %v184, 7
    %v186 = vadd.s32 %v185, 8
    %v187 = vadd.s32 %v185, 16
    %v188 = vadd.s32 %v185, 24
    %v189 = vadd.s32 %v185, 32
    %v190 = vadd.s32 %v185, 40
    %v191 = vadd.s32 %v185, 48
    %v192 = vadd.s32 %v185, 56
    %v193 = vadd.s32 %v185, 64
    %v194 = vadd.s32 %v185, 72
    %v195 = vadd.s32 %v185, 80
    %v196 = vadd.s32 %v185, 88
    %v197 = vadd.s32 %v185, 96
    %v198 = vadd.s32 %v185, 104
    %v199 = vadd.s32 %v185, 112
    %v200 = vadd.s32 %v185, 120
    %v201 = vlaneseq
    %v202 = vand.u32 %v201, 127
    %vm203 = vcmp.eq.s32.totalorder %v185, %v202
    %vm204 = vcmp.eq.s32.totalorder %v186, %v202
    %vm205 = vcmp.eq.s32.totalorder %v187, %v202
    %vm206 = vcmp.eq.s32.totalorder %v188, %v202
    %vm207 = vcmp.eq.s32.totalorder %v189, %v202
    %vm208 = vcmp.eq.s32.totalorder %v190, %v202
    %vm209 = vcmp.eq.s32.totalorder %v191, %v202
    %vm210 = vcmp.eq.s32.totalorder %v192, %v202
    %vm211 = vcmp.eq.s32.totalorder %v193, %v202
    %vm212 = vcmp.eq.s32.totalorder %v194, %v202
    %vm213 = vcmp.eq.s32.totalorder %v195, %v202
    %vm214 = vcmp.eq.s32.totalorder %v196, %v202
    %vm215 = vcmp.eq.s32.totalorder %v197, %v202
    %vm216 = vcmp.eq.s32.totalorder %v198, %v202
    %vm217 = vcmp.eq.s32.totalorder %v199, %v202
    %vm218 = vcmp.eq.s32.totalorder %v200, %v202
    %v219 = vsel %vm203, 1, 0
    %v220 = vsel %vm204, 1, 0
    %v221 = vsel %vm205, 1, 0
    %v222 = vsel %vm206, 1, 0
    %v223 = vsel %vm207, 1, 0
    %v224 = vsel %vm208, 1, 0
    %v225 = vsel %vm209, 1, 0
    %v226 = vsel %vm210, 1, 0
    %v227 = vsel %vm211, 1, 0
    %v228 = vsel %vm212, 1, 0
    %v229 = vsel %vm213, 1, 0
    %v230 = vsel %vm214, 1, 0
    %v231 = vsel %vm215, 1, 0
    %v232 = vsel %vm216, 1, 0
    %v233 = vsel %vm217, 1, 0
    %v234 = vsel %vm218, 1, 0
    %v235 = vcvt.s32.f32 %v219
    %v236 = vcvt.s32.f32 %v220
    %v237 = vcvt.s32.f32 %v221
    %v238 = vcvt.s32.f32 %v222
    %v239 = vcvt.s32.f32 %v223
    %v240 = vcvt.s32.f32 %v224
    %v241 = vcvt.s32.f32 %v225
    %v242 = vcvt.s32.f32 %v226
    %v243 = vcvt.s32.f32 %v227
    %v244 = vcvt.s32.f32 %v228
    %v245 = vcvt.s32.f32 %v229
    %v246 = vcvt.s32.f32 %v230
    %v247 = vcvt.s32.f32 %v231
    %v248 = vcvt.s32.f32 %v232
    %v249 = vcvt.s32.f32 %v233
    %v250 = vcvt.s32.f32 %v234
    %v251 = vmul.f32 %v106, %v235
    %v252 = vmul.f32 %v111, %v236
    %v253 = vmul.f32 %v116, %v237
    %v254 = vmul.f32 %v121, %v238
    %v255 = vmul.f32 %v126, %v239
    %v256 = vmul.f32 %v131, %v240
    %v257 = vmul.f32 %v136, %v241
    %v258 = vmul.f32 %v141, %v242
    %v259 = vmul.f32 %v146, %v243
    %v260 = vmul.f32 %v151, %v244
    %v261 = vmul.f32 %v156, %v245
    %v262 = vmul.f32 %v161, %v246
    %v263 = vmul.f32 %v166, %v247
    %v264 = vmul.f32 %v171, %v248
    %v265 = vmul.f32 %v176, %v249
    %v266 = vmul.f32 %v181, %v250
    %v267 = vadd.f32 %v251, %v252
    %v268 = vadd.f32 %v267, %v253
    %v269 = vadd.f32 %v268, %v254
    %v270 = vadd.f32 %v269, %v255
    %v271 = vadd.f32 %v270, %v256
    %v272 = vadd.f32 %v271, %v257
    %v273 = vadd.f32 %v272, %v258
    %v274 = vadd.f32 %v273, %v259
    %v275 = vadd.f32 %v274, %v260
    %v276 = vadd.f32 %v275, %v261
    %v277 = vadd.f32 %v276, %v262
    %v278 = vadd.f32 %v277, %v263
    %v279 = vadd.f32 %v278, %v264
    %v280 = vadd.f32 %v279, %v265
    %v281 = vadd.f32 %v280, %v266
    %v282 = vrot.slane %v281, 4
    %v283 = vadd.f32 %v281, %v282
    %v284 = vrot.slane %v283, 2
    %v285 = vadd.f32 %v283, %v284
    %v286 = vrot.slane %v285, 1
    %v287 = vadd.f32 %v285, %v286
    %v288 = vmul.f32 %v106, 2.0
    %v289 = vmul.f32 %v111, 2.0
    %v290 = vmul.f32 %v116, 2.0
    %v291 = vmul.f32 %v121, 2.0
    %v292 = vmul.f32 %v126, 2.0
    %v293 = vmul.f32 %v131, 2.0
    %v294 = vmul.f32 %v136, 2.0
    %v295 = vmul.f32 %v141, 2.0
    %v296 = vmul.f32 %v146, 2.0
    %v297 = vmul.f32 %v151, 2.0
    %v298 = vmul.f32 %v156, 2.0
    %v299 = vmul.f32 %v161, 2.0
    %v300 = vmul.f32 %v166, 2.0
    %v301 = vmul.f32 %v171, 2.0
    %v302 = vmul.f32 %v176, 2.0
    %v303 = vmul.f32 %v181, 2.0
    %v304 = vsub.f32 %v287, %v288
    %v305 = vsub.f32 %v287, %v289
    %v306 = vsub.f32 %v287, %v290
    %v307 = vsub.f32 %v287, %v291
    %v308 = vsub.f32 %v287, %v292
    %v309 = vsub.f32 %v287, %v293
    %v310 = vsub.f32 %v287, %v294
    %v311 = vsub.f32 %v287, %v295
    %v312 = vsub.f32 %v287, %v296
    %v313 = vsub.f32 %v287, %v297
    %v314 = vsub.f32 %v287, %v298
    %v315 = vsub.f32 %v287, %v299
    %v316 = vsub.f32 %v287, %v300
    %v317 = vsub.f32 %v287, %v301
    %v318 = vsub.f32 %v287, %v302
    %v319 = vsub.f32 %v287, %v303
    %320 = vst [vmem:[#allocation5] sm:$0xff] %v304
    %321 = vst [vmem:[#allocation5 + $0x8] sm:$0xff] %v305
    %322 = vst [vmem:[#allocation5 + $0x10] sm:$0xff] %v306
    %323 = vst [vmem:[#allocation5 + $0x18] sm:$0xff] %v307
    %324 = vst [vmem:[#allocation5 + $0x20] sm:$0xff] %v308
    %325 = vst [vmem:[#allocation5 + $0x28] sm:$0xff] %v309
    %326 = vst [vmem:[#allocation5 + $0x30] sm:$0xff] %v310
    %327 = vst [vmem:[#allocation5 + $0x38] sm:$0xff] %v311
    %328 = vst [vmem:[#allocation5 + $0x40] sm:$0xff] %v312
    %329 = vst [vmem:[#allocation5 + $0x48] sm:$0xff] %v313
    %330 = vst [vmem:[#allocation5 + $0x50] sm:$0xff] %v314
    %331 = vst [vmem:[#allocation5 + $0x58] sm:$0xff] %v315
    %332 = vst [vmem:[#allocation5 + $0x60] sm:$0xff] %v316
    %333 = vst [vmem:[#allocation5 + $0x68] sm:$0xff] %v317
    %334 = vst [vmem:[#allocation5 + $0x70] sm:$0xff] %v318
    %335 = vst [vmem:[#allocation5 + $0x78] sm:$0xff] %v319
    // Predicated region
    $region10: #{tpu_custom_call.1} parent=1 // pred_check
      _
    $region11: #{tpu_custom_call.1} parent=1 // pred_check_branch
      %337 = sbr.rel (0) target = $region13
    $region12: #{tpu_custom_call.1} parent=1 // pred_region
      %s339 = ssub.s32 2048, 2048
      %340 = vsyncadd [#allocation4], %s339
      %s341 = sshll.u32 [#allocation5], 4
      %s342 = int_to_ptr.vmem [resolvable:$true] %s341
      %347 = dma.vmem_to_hbm [thread:$0]  %s342, 2048, %s1, [#allocation4], 128, 128, 8
    $region13: #{tpu_custom_call.1} parent=1 // pred_fallthru
      _
    // Predicated region
    $region14: #{tpu_custom_call.1} parent=1 // pred_check
      _
    $region15: #{tpu_custom_call.1} parent=1 // pred_check_branch
      %349 = sbr.rel (0) target = $region17
    $region16: #{tpu_custom_call.1} parent=1 // pred_region
      %350 = dma.done [#allocation4], 2048
    $region17: #{tpu_custom_call.1} parent=1 // pred_fallthru
      _
    %351 = vsyncpa [#allocation3], 1
    %352 = vsyncpa [#allocation4], 1

</llo_original>
